<compile_context>
chip_gen: v7x
topology: tpu7x:2x2x1
jax: 0.10.0
libtpu: 0.0.40
codegen_flags: <defaults>
</compile_context>

<pallas_src>
import math
import functools

import jax
import jax.numpy as jnp
import numpy as np
from jax.experimental import pallas as pl
from jax.experimental.pallas import tpu as pltpu


def make_beta_cosine(T, cosine_s=0.008):
    timesteps = jnp.arange(T + 1, dtype=jnp.float32) / T + cosine_s
    alphas = timesteps / (1.0 + cosine_s) * math.pi / 2.0
    alphas = jnp.cos(alphas) ** 2
    alphas = alphas / alphas[0]
    betas = 1.0 - alphas[1:] / alphas[:-1]
    return jnp.minimum(betas, 0.999)


def _trainer_kernel(x0_ref, nz_ref, sab_ref, somab_ref, fac_ref, w_ref, b_ref, out_ref):
    """Whole-batch, packed layout: rows = B*C (sublanes), cols = H*W (lanes).

    x0_ref, nz_ref : (B*C, HW)   f32
    sab_ref, somab_ref, fac_ref : (B*C, 1) per-row scale vectors
    w_ref : (B*C, B*C) block-diagonal channel-mixing weight (kron(I_B, W))
    b_ref : (B*C, 1)   tiled bias
    out_ref : (1, 1)   scalar loss
    """
    x0 = x0_ref[...]
    nz = nz_ref[...]
    # q_sample for all samples at once (per-row broadcast multiplies)
    z_t = sab_ref[...] * x0 + somab_ref[...] * nz
    # synthetic model: block-diagonal 1x1 conv == ONE small MXU matmul for the whole batch
    x0_rec = jnp.dot(w_ref[...], z_t, preferred_element_type=jnp.float32) + b_ref[...]
    dx = x0_rec - x0
    # fac_row already folds loss-type combine (x / eps / max-of-both via the exact
    # identity loss_eps = (sab/somab)^2 * loss_x0) and the 1/(B*C*HW) normalization.
    out_ref[...] = jnp.sum(fac_ref[...] * (dx * dx)).reshape(1, 1)


def diffusion_loss_pallas(x0p, nzp, sab_row, somab_row, fac_row, w_bd, b_bd):
    R, HW = x0p.shape  # R = B*C
    loss = pl.pallas_call(
        _trainer_kernel,
        out_shape=jax.ShapeDtypeStruct((1, 1), jnp.float32),
        grid=(1,),
        in_specs=[
            pl.BlockSpec((R, HW), lambda i: (0, 0)),
            pl.BlockSpec((R, HW), lambda i: (0, 0)),
            pl.BlockSpec((R, 1), lambda i: (0, 0)),
            pl.BlockSpec((R, 1), lambda i: (0, 0)),
            pl.BlockSpec((R, 1), lambda i: (0, 0)),
            pl.BlockSpec((R, R), lambda i: (0, 0)),
            pl.BlockSpec((R, 1), lambda i: (0, 0)),
        ],
        out_specs=pl.BlockSpec((1, 1), lambda i: (0, 0)),
        compiler_params=pltpu.CompilerParams(dimension_semantics=("arbitrary",)),
    )(x0p, nzp, sab_row, somab_row, fac_row, w_bd, b_bd)
    return loss[0, 0]


class GaussianDiffusionTrainer:
    """JAX/Pallas port. Only mean_type='xstart' is implemented (loss_type x/eps/both)."""
    # TODO(synk): mean_type='epsilon' branch not implemented (same kernel structure, eps target).
    # TODO(synk): the generic nn.Module `model` is replaced by a deterministic synthetic
    #             1x1-conv channel mixer (weight + bias) so the full forward stays in-kernel.

    def __init__(self, model_params, T, time_scale, loss_type='both', mean_type='xstart'):
        assert mean_type == 'xstart'
        self.T = T
        self.time_scale = time_scale
        self.loss_type = loss_type
        self.w, self.b = model_params                      # synthetic model weights
        self.betas = make_beta_cosine(T * time_scale + 1)
        alphas_bar = jnp.cumprod(1.0 - self.betas)
        self.sqrt_alphas_bar = jnp.sqrt(alphas_bar)
        self.sqrt_one_minus_alphas_bar = jnp.sqrt(1.0 - alphas_bar)

    def preprocess(self, x_0, key):
        B, C, H, W = x_0.shape
        kt, kn = jax.random.split(key)
        t = jax.random.randint(kt, (B,), 0, self.T + 1)            # torch.randint(T+1)
        noise = jax.random.normal(kn, x_0.shape, dtype=jnp.float32)
        idx = t * self.time_scale
        sab = self.sqrt_alphas_bar[idx].astype(jnp.float32)                  # (B,)
        somab = self.sqrt_one_minus_alphas_bar[idx].astype(jnp.float32)      # (B,)
        x0_f = x_0.reshape(B, C, H * W).astype(jnp.float32)
        nz_f = noise.reshape(B, C, H * W)
        return x0_f, nz_f, sab, somab

    def _pack(self, x0_f, nz_f, sab, somab):
        """Host-side layout plumbing: pack batch onto sublanes, fold loss combine into fac."""
        B, C, HW = x0_f.shape
        x0p = x0_f.reshape(B * C, HW)
        nzp = nz_f.reshape(B * C, HW)
        sab_row = jnp.repeat(sab, C).reshape(B * C, 1)
        somab_row = jnp.repeat(somab, C).reshape(B * C, 1)
        # exact identity: loss_eps = (sab/somab)^2 * loss_x0
        ratio = (sab / somab) ** 2                                           # (B,)
        if self.loss_type == 'x':
            per_sample = jnp.ones_like(ratio)
        elif self.loss_type == 'eps':
            per_sample = ratio
        else:  # 'both': max(loss_x0, ratio*loss_x0) = loss_x0 * max(1, ratio)
            per_sample = jnp.maximum(1.0, ratio)
        fac = per_sample / float(C * HW * B)                                 # folds all means
        fac_row = jnp.repeat(fac, C).reshape(B * C, 1)
        # block-diagonal weight + tiled bias -> one matmul for the whole batch
        w_bd = jnp.kron(jnp.eye(B, dtype=jnp.float32), self.w.astype(jnp.float32))
        b_bd = jnp.tile(self.b.reshape(C, 1).astype(jnp.float32), (B, 1))
        return x0p, nzp, sab_row, somab_row, fac_row, w_bd, b_bd

    def __call__(self, x_0, key):
        x0_f, nz_f, sab, somab = self.preprocess(x_0, key)
        packed = self._pack(x0_f, nz_f, sab, somab)
        return diffusion_loss_pallas(*packed)


def _reference_loss(x0_f, nz_f, sab, somab, w, bias2d, loss_type='both'):
    """Pure-JAX mirror of the PyTorch forward (explicit eps formula), for checking."""
    z_t = sab * x0_f + somab * nz_f
    x0_rec = jnp.einsum('ij,bjk->bik', w, z_t) + bias2d[None]
    loss_x0 = jnp.mean((x0_rec - x0_f) ** 2, axis=(1, 2))
    eps_pred = (z_t - sab * x0_rec) / somab
    loss_eps = jnp.mean((eps_pred - nz_f) ** 2, axis=(1, 2))
    if loss_type == 'x':
        return jnp.mean(loss_x0)
    elif loss_type == 'eps':
        return jnp.mean(loss_eps)
    return jnp.mean(jnp.maximum(loss_x0, loss_eps))


if __name__ == "__main__":
    B, C, H, W = 2, 4, 16, 16
    T, time_scale = 10, 2

    key = jax.random.PRNGKey(0)
    kx, kw, kb, kfwd = jax.random.split(key, 4)

    x_0 = jax.random.normal(kx, (B, C, H, W), dtype=jnp.float32)
    # deterministic synthetic model parameters (1x1 conv over channels)
    w = jnp.eye(C, dtype=jnp.float32) + 0.05 * jax.random.normal(kw, (C, C), dtype=jnp.float32)
    b = 0.01 * jax.random.normal(kb, (C,), dtype=jnp.float32)

    trainer = GaussianDiffusionTrainer((w, b), T=T, time_scale=time_scale,
                                       loss_type='both', mean_type='xstart')

    loss = trainer(x_0, kfwd)
    loss = jax.block_until_ready(loss)

    # correctness check against pure-JAX reference (explicit PyTorch-style formulas)
    x0_f, nz_f, sab, somab = trainer.preprocess(x_0, kfwd)
    ref = _reference_loss(x0_f, nz_f, sab.reshape(B, 1, 1), somab.reshape(B, 1, 1),
                          w, b.reshape(C, 1), loss_type='both')
    np.testing.assert_allclose(np.asarray(loss), np.asarray(ref), rtol=1e-4, atol=1e-5)

    print("KERNEL_OK")
</pallas_src>

<mosaic_0001>
module attributes {stable_mosaic.version = 11 : i64} {
  func.func @_trainer_kernel(%arg0: i32, %arg1: memref<8x256xf32, #tpu.memory_space<vmem>>, %arg2: memref<8x256xf32, #tpu.memory_space<vmem>>, %arg3: memref<8x1xf32, #tpu.memory_space<vmem>>, %arg4: memref<8x1xf32, #tpu.memory_space<vmem>>, %arg5: memref<8x1xf32, #tpu.memory_space<vmem>>, %arg6: memref<8x8xf32, #tpu.memory_space<vmem>>, %arg7: memref<8x1xf32, #tpu.memory_space<vmem>>, %arg8: memref<1x1xf32, #tpu.memory_space<vmem>>) attributes {dimension_semantics = [#tpu.dimension_semantics<arbitrary>], iteration_bounds = array<i64: 1>, scalar_prefetch = 0 : i64, scratch_operands = 0 : i64, tpu.core_type = #tpu.core_type<tc>, window_params = [{pipeline_mode = #tpu.pipeline_mode<synchronous>, transform_indices = @transform_0, window_bounds = array<i64: 8, 256>}, {pipeline_mode = #tpu.pipeline_mode<synchronous>, transform_indices = @transform_1, window_bounds = array<i64: 8, 256>}, {pipeline_mode = #tpu.pipeline_mode<synchronous>, transform_indices = @transform_2, window_bounds = array<i64: 8, 1>}, {pipeline_mode = #tpu.pipeline_mode<synchronous>, transform_indices = @transform_3, window_bounds = array<i64: 8, 1>}, {pipeline_mode = #tpu.pipeline_mode<synchronous>, transform_indices = @transform_4, window_bounds = array<i64: 8, 1>}, {pipeline_mode = #tpu.pipeline_mode<synchronous>, transform_indices = @transform_5, window_bounds = array<i64: 8, 8>}, {pipeline_mode = #tpu.pipeline_mode<synchronous>, transform_indices = @transform_6, window_bounds = array<i64: 8, 1>}, {pipeline_mode = #tpu.pipeline_mode<synchronous>, transform_indices = @transform_7, window_bounds = array<i64: 1, 1>}]} {
    %c0 = arith.constant 0 : index
    %c0_0 = arith.constant 0 : index
    %0 = vector.load %arg1[%c0, %c0_0] : memref<8x256xf32, #tpu.memory_space<vmem>>, vector<8x256xf32>
    %c0_1 = arith.constant 0 : index
    %c0_2 = arith.constant 0 : index
    %1 = vector.load %arg2[%c0_1, %c0_2] : memref<8x256xf32, #tpu.memory_space<vmem>>, vector<8x256xf32>
    %c0_3 = arith.constant 0 : index
    %c0_4 = arith.constant 0 : index
    %2 = vector.load %arg3[%c0_3, %c0_4] : memref<8x1xf32, #tpu.memory_space<vmem>>, vector<8x1xf32>
    %3 = vector.broadcast %2 : vector<8x1xf32> to vector<8x256xf32>
    %4 = arith.mulf %3, %0 : vector<8x256xf32>
    %c0_5 = arith.constant 0 : index
    %c0_6 = arith.constant 0 : index
    %5 = vector.load %arg4[%c0_5, %c0_6] : memref<8x1xf32, #tpu.memory_space<vmem>>, vector<8x1xf32>
    %6 = vector.broadcast %5 : vector<8x1xf32> to vector<8x256xf32>
    %7 = arith.mulf %6, %1 : vector<8x256xf32>
    %8 = arith.addf %4, %7 : vector<8x256xf32>
    %c0_7 = arith.constant 0 : index
    %c0_8 = arith.constant 0 : index
    %9 = vector.load %arg6[%c0_7, %c0_8] : memref<8x8xf32, #tpu.memory_space<vmem>>, vector<8x8xf32>
    %cst = arith.constant dense<0.000000e+00> : vector<8x256xf32>
    %10 = tpu.matmul %9, %8, %cst {dimension_numbers = #tpu.dot_dimension_numbers<[1], [0], [0], [1], [0, 0, 1, 1], [], []>} : vector<8x8xf32>, vector<8x256xf32>, vector<8x256xf32> -> vector<8x256xf32>
    %c0_9 = arith.constant 0 : index
    %c0_10 = arith.constant 0 : index
    %11 = vector.load %arg7[%c0_9, %c0_10] : memref<8x1xf32, #tpu.memory_space<vmem>>, vector<8x1xf32>
    %12 = vector.broadcast %11 : vector<8x1xf32> to vector<8x256xf32>
    %13 = arith.addf %10, %12 : vector<8x256xf32>
    %14 = arith.subf %13, %0 : vector<8x256xf32>
    %c0_11 = arith.constant 0 : index
    %c0_12 = arith.constant 0 : index
    %15 = vector.load %arg5[%c0_11, %c0_12] : memref<8x1xf32, #tpu.memory_space<vmem>>, vector<8x1xf32>
    %16 = arith.mulf %14, %14 : vector<8x256xf32>
    %17 = vector.broadcast %15 : vector<8x1xf32> to vector<8x256xf32>
    %18 = arith.mulf %17, %16 : vector<8x256xf32>
    %19 = vector.shape_cast %18 : vector<8x256xf32> to vector<1x8x256xf32>
    %cst_13 = arith.constant dense<0.000000e+00> : vector<1xf32>
    %20 = vector.multi_reduction <add>, %19, %cst_13 [1, 2] : vector<1x8x256xf32> to vector<1xf32>
    %21 = vector.shape_cast %20 : vector<1xf32> to vector<1x1x1xf32>
    %22 = vector.extract %21[0, 0, 0] : f32 from vector<1x1x1xf32>
    %23 = vector.broadcast %22 : f32 to vector<1x1xf32>
    %c0_14 = arith.constant 0 : index
    %c0_15 = arith.constant 0 : index
    %24 = vector.load %arg8[%c0_14, %c0_15] : memref<1x1xf32, #tpu.memory_space<vmem>>, vector<1x1xf32>
    tpu.vector_store %arg8[%c0_14, %c0_15], %23 {strides = array<i32>} : memref<1x1xf32, #tpu.memory_space<vmem>>, vector<1x1xf32>,
    return
  }
  func.func @transform_0(%arg0: i32) -> (i32, i32) {
    %c0_i32 = arith.constant 0 : i32
    %c0_i32_0 = arith.constant 0 : i32
    %c0_i32_1 = arith.constant 0 : i32
    return %c0_i32, %c0_i32_0 : i32, i32
  }
  func.func @transform_1(%arg0: i32) -> (i32, i32) {
    %c0_i32 = arith.constant 0 : i32
    %c0_i32_0 = arith.constant 0 : i32
    %c0_i32_1 = arith.constant 0 : i32
    return %c0_i32, %c0_i32_0 : i32, i32
  }
  func.func @transform_2(%arg0: i32) -> (i32, i32) {
    %c0_i32 = arith.constant 0 : i32
    %c0_i32_0 = arith.constant 0 : i32
    %c0_i32_1 = arith.constant 0 : i32
    return %c0_i32, %c0_i32_0 : i32, i32
  }
  func.func @transform_3(%arg0: i32) -> (i32, i32) {
    %c0_i32 = arith.constant 0 : i32
    %c0_i32_0 = arith.constant 0 : i32
    %c0_i32_1 = arith.constant 0 : i32
    return %c0_i32, %c0_i32_0 : i32, i32
  }
  func.func @transform_4(%arg0: i32) -> (i32, i32) {
    %c0_i32 = arith.constant 0 : i32
    %c0_i32_0 = arith.constant 0 : i32
    %c0_i32_1 = arith.constant 0 : i32
    return %c0_i32, %c0_i32_0 : i32, i32
  }
  func.func @transform_5(%arg0: i32) -> (i32, i32) {
    %c0_i32 = arith.constant 0 : i32
    %c0_i32_0 = arith.constant 0 : i32
    %c0_i32_1 = arith.constant 0 : i32
    return %c0_i32, %c0_i32_0 : i32, i32
  }
  func.func @transform_6(%arg0: i32) -> (i32, i32) {
    %c0_i32 = arith.constant 0 : i32
    %c0_i32_0 = arith.constant 0 : i32
    %c0_i32_1 = arith.constant 0 : i32
    return %c0_i32, %c0_i32_0 : i32, i32
  }
  func.func @transform_7(%arg0: i32) -> (i32, i32) {
    %c0_i32 = arith.constant 0 : i32
    %c0_i32_0 = arith.constant 0 : i32
    %c0_i32_1 = arith.constant 0 : i32
    return %c0_i32, %c0_i32_0 : i32, i32
  }
}

</mosaic_0001>

<llo_original>
// kernel: tpu_custom_call.1
$region0: #{tpu_custom_call.1}
  #allocation0 [shape = 'u32[]', space=smem, size = 0x4, offset = 0x4, fixed_abs, tag = 'smem constant byte address 0x4 - core index']
  #allocation1 [shape = 'u32[144,128]{1,0:T(1,128)}', space=vmem, size = 0x12000, scoped, tag = 'internal scratch']
  %s0 = inlined_call_operand.vmem [shape: f32[8,256], index: 0, kind: input, shape index: {}]
  %s1 = inlined_call_operand.vmem [shape: f32[8,256], index: 1, kind: input, shape index: {}]
  %s2 = inlined_call_operand.vmem [shape: f32[8,1], index: 2, kind: input, shape index: {}]
  %s3 = inlined_call_operand.vmem [shape: f32[8,1], index: 3, kind: input, shape index: {}]
  %s4 = inlined_call_operand.vmem [shape: f32[8,1], index: 4, kind: input, shape index: {}]
  %s5 = inlined_call_operand.vmem [shape: f32[8,8], index: 5, kind: input, shape index: {}]
  %s6 = inlined_call_operand.vmem [shape: f32[8,1], index: 6, kind: input, shape index: {}]
  %s7 = inlined_call_operand.hbm [shape: f32[1,1], index: 7, kind: output, shape index: {}]
  %s8 = sld [smem:[#allocation0]]
  $region38: #{tpu_custom_call.1} parent=0
    _
  %s10 = ssub.s32 1, %s8
  %s11 = scalar_select 0, %s10, %s8
  $region1: #{tpu_custom_call.1} parent=0
    #allocation2 [shape = 'u8[512]{0}', space=vmem, size = 0x400, scoped, tag = 'output window, operand 0, single buffered']
    #allocation3 [shape = 's32[1]{0}', space=sflag, size = 0x4, scoped, tag = 'scoped memory for tpu_custom_call.1']
    %12 = vsyncpa [#allocation3], 0
    // Predicated region
    $region2: #{tpu_custom_call.1} parent=1 // pred_check
      _
    $region3: #{tpu_custom_call.1} parent=1 // pred_check_branch
      %14 = sbr.rel (0) target = $region5
    $region4: #{tpu_custom_call.1} parent=1 // pred_region
      _
    $region5: #{tpu_custom_call.1} parent=1 // pred_fallthru
      _
    // Predicated region
    $region6: #{tpu_custom_call.1} parent=1 // pred_check
      _
    $region7: #{tpu_custom_call.1} parent=1 // pred_check_branch
      %16 = sbr.rel (0) target = $region9
    $region8: #{tpu_custom_call.1} parent=1 // pred_region
      _
    $region9: #{tpu_custom_call.1} parent=1 // pred_fallthru
      _
    // Predicated region
    $region10: #{tpu_custom_call.1} parent=1 // pred_check
      _
    $region11: #{tpu_custom_call.1} parent=1 // pred_check_branch
      %18 = sbr.rel (0) target = $region13
    $region12: #{tpu_custom_call.1} parent=1 // pred_region
      _
    $region13: #{tpu_custom_call.1} parent=1 // pred_fallthru
      _
    // Predicated region
    $region14: #{tpu_custom_call.1} parent=1 // pred_check
      _
    $region15: #{tpu_custom_call.1} parent=1 // pred_check_branch
      %20 = sbr.rel (0) target = $region17
    $region16: #{tpu_custom_call.1} parent=1 // pred_region
      _
    $region17: #{tpu_custom_call.1} parent=1 // pred_fallthru
      _
    // Predicated region
    $region18: #{tpu_custom_call.1} parent=1 // pred_check
      _
    $region19: #{tpu_custom_call.1} parent=1 // pred_check_branch
      %22 = sbr.rel (0) target = $region21
    $region20: #{tpu_custom_call.1} parent=1 // pred_region
      _
    $region21: #{tpu_custom_call.1} parent=1 // pred_fallthru
      _
    // Predicated region
    $region22: #{tpu_custom_call.1} parent=1 // pred_check
      _
    $region23: #{tpu_custom_call.1} parent=1 // pred_check_branch
      %24 = sbr.rel (0) target = $region25
    $region24: #{tpu_custom_call.1} parent=1 // pred_region
      _
    $region25: #{tpu_custom_call.1} parent=1 // pred_fallthru
      _
    // Predicated region
    $region26: #{tpu_custom_call.1} parent=1 // pred_check
      _
    $region27: #{tpu_custom_call.1} parent=1 // pred_check_branch
      %26 = sbr.rel (0) target = $region29
    $region28: #{tpu_custom_call.1} parent=1 // pred_region
      _
    $region29: #{tpu_custom_call.1} parent=1 // pred_fallthru
      _
    %v27 = vld [vmem:[%s0] sm:$0xff]
    %v28 = vld [vmem:[%s0 + $0x8] sm:$0xff]
    %v29 = vld [vmem:[%s1] sm:$0xff]
    %v30 = vld [vmem:[%s1 + $0x8] sm:$0xff]
    %v31 = vld [vmem:[%s2] sm:$0xff]
    %33 = vset.pattern.permute.xlu0 0
    %34 = vperm.xlu0 %33, %v31
    %v35 = vpop.permute.xlu0 %34
    %v37 = vmul.f32 %v35, %v27
    %v38 = vmul.f32 %v35, %v28
    %v39 = vld [vmem:[%s3] sm:$0xff]
    %41 = vset.pattern.permute.xlu0 0
    %42 = vperm.xlu0 %41, %v39
    %v43 = vpop.permute.xlu0 %42
    %v45 = vmul.f32 %v43, %v29
    %v46 = vmul.f32 %v43, %v30
    %v47 = vadd.f32 %v37, %v45
    %v48 = vadd.f32 %v38, %v46
    %v49 = vld [vmem:[%s5] sm:$0xff]
    %v50 = vld [vmem:[%s6] sm:$0xff]
    %52 = vset.pattern.permute.xlu0 0
    %53 = vperm.xlu0 %52, %v50
    %v54 = vpop.permute.xlu0 %53
    %vm56 = vcmask 64512
    %v58 = vsel %vm56, %v49, 0
    %60 = vmatprep.subr.mxu0 %v48
    %61 = vmatpush1.msra.mxu0 %v47
    %62 = vmatprep.subr.mxu0 0.0
    %63 = vmatpush1.msra.mxu0 0.0
    %64 = vmatprep.subr.mxu0 0.0
    %65 = vmatpush1.msra.mxu0 0.0
    %66 = vmatprep.subr.mxu0 0.0
    %67 = vmatpush1.msra.mxu0 0.0
    %68 = vmatprep.subr.mxu0 0.0
    %69 = vmatpush1.msra.mxu0 0.0
    %70 = vmatprep.subr.mxu0 0.0
    %71 = vmatpush1.msra.mxu0 0.0
    %72 = vmatprep.subr.mxu0 0.0
    %73 = vmatpush1.msra.mxu0 0.0
    %74 = vmatprep.subr.mxu0 0.0
    %75 = vmatpush1.msra.mxu0 0.0
    %76 = vmatprep.subr.mxu0 0.0
    %77 = vmatpush1.msra.mxu0 0.0
    %78 = vmatprep.subr.mxu0 0.0
    %79 = vmatpush1.msra.mxu0 0.0
    %80 = vmatprep.subr.mxu0 0.0
    %81 = vmatpush1.msra.mxu0 0.0
    %82 = vmatprep.subr.mxu0 0.0
    %83 = vmatpush1.msra.mxu0 0.0
    %84 = vmatprep.subr.mxu0 0.0
    %85 = vmatpush1.msra.mxu0 0.0
    %86 = vmatprep.subr.mxu0 0.0
    %87 = vmatpush1.msra.mxu0 0.0
    %88 = vmatprep.subr.mxu0 0.0
    %89 = vmatpush1.msra.mxu0 0.0
    %90 = vmatprep.subr.mxu0 0.0
    %91 = vmatpush1.msra.mxu0 0.0
    %92 = vmatprep.subr.mxu0 0.0
    %93 = vmatpush1.msra.mxu0 0.0
    %94 = vmatprep.subr.mxu0 0.0
    %95 = vmatpush1.msra.mxu0 0.0
    %96 = vmatprep.subr.mxu0 0.0
    %97 = vmatpush1.msra.mxu0 0.0
    %98 = vmatprep.subr.mxu0 0.0
    %99 = vmatpush1.msra.mxu0 0.0
    %100 = vmatprep.subr.mxu0 0.0
    %101 = vmatpush1.msra.mxu0 0.0
    %102 = vmatprep.subr.mxu0 0.0
    %103 = vmatpush1.msra.mxu0 0.0
    %104 = vmatprep.subr.mxu0 0.0
    %105 = vmatpush1.msra.mxu0 0.0
    %106 = vmatprep.subr.mxu0 0.0
    %107 = vmatpush1.msra.mxu0 0.0
    %108 = vmatprep.subr.mxu0 0.0
    %109 = vmatpush1.msra.mxu0 0.0
    %110 = vmatprep.subr.mxu0 0.0
    %111 = vmatpush1.msra.mxu0 0.0
    %112 = vmatprep.subr.mxu0 0.0
    %113 = vmatpush1.msra.mxu0 0.0
    %114 = vmatprep.subr.mxu0 0.0
    %115 = vmatpush1.msra.mxu0 0.0
    %116 = vmatprep.subr.mxu0 0.0
    %117 = vmatpush1.msra.mxu0 0.0
    %118 = vmatprep.subr.mxu0 0.0
    %119 = vmatpush1.msra.mxu0 0.0
    %120 = vmatprep.subr.mxu0 0.0
    %121 = vmatpush1.msra.mxu0 0.0
    %122 = vmatprep.subr.mxu0 0.0
    %123 = vmatpush1.msra.mxu0 0.0
    %124 = vmatprep.mubr.f32.mxu0 0.0
    %125 = vmatmul.mubr.f32.gmra.mrb[0].mxu0 %v58
    %v126 = vpop.f32.mrb[0].mxu0
    %v127 = vadd.f32 %v54, %v126
    %v128 = vpop.f32.mrb[0].mxu0
    %v129 = vadd.f32 %v54, %v128
    %130 = vdwg.mxu0
    %v131 = vsub.f32 %v127, %v27
    %v132 = vsub.f32 %v129, %v28
    %v133 = vld [vmem:[%s4] sm:$0xff]
    %v134 = vmul.f32 %v131, %v131
    %v135 = vmul.f32 %v132, %v132
    %137 = vset.pattern.permute.xlu0 0
    %138 = vperm.xlu0 %137, %v133
    %v139 = vpop.permute.xlu0 %138
    %v141 = vmul.f32 %v139, %v134
    %v142 = vmul.f32 %v139, %v135
    %v143 = vadd.f32 %v141, %v142
    %144 = vadd.xlane.f32.xlu0 %v143
    %v145 = vpop.xlane.xlu0 %144
    %v146 = vrot.slane %v145, 4
    %v147 = vadd.f32 %v145, %v146
    %v148 = vrot.slane %v147, 2
    %v149 = vadd.f32 %v147, %v148
    %v150 = vrot.slane %v149, 1
    %v151 = vadd.f32 %v149, %v150
    %s152 = vtos %v151
    %v153 = vstv %s152
    %vm154 = vcmask 0
    %155 = vst.msk [vmem:[#allocation2] sm:$0x1] %vm154, %v153
    // Predicated region
    $region30: #{tpu_custom_call.1} parent=1 // pred_check
      _
    $region31: #{tpu_custom_call.1} parent=1 // pred_check_branch
      %157 = sbr.rel (0) target = $region33
    $region32: #{tpu_custom_call.1} parent=1 // pred_region
      %s159 = ssub.s32 16, 16
      %160 = vsyncadd [#allocation3], %s159
      %s162 = sshll.u32 [#allocation2], 4
      %s163 = int_to_ptr.vmem [resolvable:$true] %s162
      %165 = dma.vmem_to_hbm [thread:$0]  %s163, 16, %s7, [#allocation3]
    $region33: #{tpu_custom_call.1} parent=1 // pred_fallthru
      _
    // Predicated region
    $region34: #{tpu_custom_call.1} parent=1 // pred_check
      _
    $region35: #{tpu_custom_call.1} parent=1 // pred_check_branch
      %167 = sbr.rel (0) target = $region37
    $region36: #{tpu_custom_call.1} parent=1 // pred_region
      %168 = dma.done [#allocation3], 16
    $region37: #{tpu_custom_call.1} parent=1 // pred_fallthru
      _
    %169 = vsyncpa [#allocation3], 1

</llo_original>
